<compile_context>
chip_gen: v5e
topology: v5e:2x2
jax: 0.10.0
libtpu: 0.0.40
codegen_flags: <defaults>
</compile_context>

<pallas_src>
import math
from functools import partial

import numpy as np
import jax
import jax.numpy as jnp
from jax.experimental import pallas as pl
from jax.experimental.pallas import tpu as pltpu


def _round_up(x, m):
    return (x + m - 1) // m * m


# ----------------------------- fused Pallas kernel ---------------------------

def _critic_fused_kernel(x_ref, wa_ref, wb_ref, o_ref, *, T, D, H, LANES,
                         a_bias_row, b1_row, w2_row, b2_row):
    B_blk = o_ref.shape[0]

    # shared input linear: (B_blk*T, D) @ (D, H) + b_in   (tiny K -> keep f32)
    w_in = wa_ref[0:D, :]
    b_in = wa_ref[a_bias_row:a_bias_row + 1, :]
    h = jnp.dot(x_ref[...], w_in, preferred_element_type=jnp.float32) + b_in

    cdt = wb_ref.dtype          # matmul compute dtype (bf16 in production)

    # FFT mixing folded into ffw Linear1, 4 nets lane-concatenated:
    # (B_blk*T, H) @ (H, LANES) -> lane-dense (LANES == 128)
    w1 = wb_ref[0:H, :]
    b1 = wb_ref[b1_row:b1_row + 1, :].astype(jnp.float32)
    z = jnp.dot(h.astype(cdt), w1, preferred_element_type=jnp.float32) + b1
    z = jnp.sin(z)                        # Sine()
    z = jnp.where(z > 0, z, 0.1 * z)      # LeakyReLU(0.1)

    # mean over the seq axis: rows are (b, t) row-major and each grid block is
    # a whole multiple of T rows; T == 8 matches the f32 sublane tile so the
    # reshape is layout-free and the reduction runs on the XLU.
    zm = jnp.mean(z.reshape(B_blk, T, LANES), axis=1)           # (B_blk, LANES)

    # block-diagonal ffw Linear2 for all 4 nets, zero-padded to LANES output
    # columns so the store is an unmasked lane-dense vst.
    w2 = wb_ref[w2_row:w2_row + LANES, :]
    b2 = wb_ref[b2_row:b2_row + 1, :].astype(jnp.float32)
    o_ref[...] = jnp.dot(zm.astype(cdt), w2,
                         preferred_element_type=jnp.float32) + b2


# ------------------------------ parameters ----------------------------------

def init_params(key, state_dim, action_dim, seq, hidden_dim=32):
    """Base (un-fused) parameters, mirroring the PyTorch module layout."""
    D = state_dim + action_dim
    H = hidden_dim
    A = action_dim
    ks = jax.random.split(key, 8)

    def unif(k, shape, fan_in):
        bound = 1.0 / math.sqrt(fan_in)
        return jax.random.uniform(k, shape, jnp.float32, -bound, bound)

    # Critic.input : Linear(D, H)   (stored pre-transposed as (D, H))
    w_in = unif(ks[0], (D, H), D)
    b_in = unif(ks[1], (1, H), D)

    # FourierTransform.tri_W (row-normalized lower-triangular matrix)
    tri = jnp.tril(jnp.ones((seq, seq), jnp.float32))
    tri_w = tri / jnp.sum(tri, axis=1, keepdims=True)

    # 4 nets (qA, qB, qC, s2), weights stacked on a leading "net" axis.
    wfft = unif(ks[2], (4, seq, seq), seq)            # fft.weight
    wfft_eff = tri_w[None, :, :] * wfft               # tri_W * fft.weight
    wfft_t = jnp.transpose(wfft_eff, (0, 2, 1))       # Weff^T, for x @ Weff^T

    w1_t = unif(ks[3], (4, H, H), H)                  # ffw Linear1, (in, out)
    b1 = unif(ks[4], (4, 1, H), H)
    w2_t = unif(ks[5], (4, H, A), H)                  # ffw Linear2, (in, out)
    b2 = unif(ks[6], (4, 1, A), H)

    return dict(w_in=w_in, b_in=b_in, wfft_t=wfft_t,
                w1_t=w1_t, b1=b1, w2_t=w2_t, b2=b2)


def pack_params(base, matmul_dtype=jnp.bfloat16):
    """Fold FFT mixing into ffw Linear1 and pack everything into two slabs.

    All folding is done in float64 numpy so pack-time rounding never pollutes
    the numerics; only the final cast to the storage dtype loses precision.
    """
    b64 = {k: np.asarray(v, np.float64) for k, v in base.items()}
    w_in = b64["w_in"]                              # (D, H)
    D, H = w_in.shape
    T = b64["wfft_t"].shape[-1]
    A = b64["w2_t"].shape[-1]
    assert H % T == 0, "fused kernel assumes seq divides hidden_dim"
    m = H // T
    eye_m = np.eye(m)

    LANES = max(4 * H, 128)                         # lane-dense output width

    # G_k = block_diag(m copies of Weff_k^T) folded into ffw Linear1, the 4
    # nets concatenated on the output (lane) axis -> (H, 4H).
    w1_cat = np.concatenate(
        [np.kron(eye_m, b64["wfft_t"][k]) @ b64["w1_t"][k] for k in range(4)],
        axis=1)
    b1_cat = np.concatenate([b64["b1"][k] for k in range(4)], axis=1)   # (1,4H)
    b2_cat = np.concatenate([b64["b2"][k] for k in range(4)], axis=1)   # (1,4A)

    # ---- slab A (f32, H lanes): input Linear weight + bias, 8-row aligned.
    a_bias_row = _round_up(D, 8)
    rows_a = _round_up(a_bias_row + 1, 8)
    slab_a = np.zeros((rows_a, H), np.float64)
    slab_a[0:D] = w_in
    slab_a[a_bias_row] = b64["b_in"][0]

    # ---- slab B (matmul dtype, LANES lanes): w1 | b1 | w2 | b2, 8-row aligned.
    b1_row = _round_up(H, 8)
    w2_row = _round_up(b1_row + 1, 8)
    b2_row = _round_up(w2_row + LANES, 8)
    rows_b = _round_up(b2_row + 1, 8)
    slab_b = np.zeros((rows_b, LANES), np.float64)
    slab_b[0:H, 0:4 * H] = w1_cat
    slab_b[b1_row, 0:4 * H] = b1_cat[0]
    for k in range(4):                              # block-diagonal W2 (padded)
        slab_b[w2_row + k * H: w2_row + (k + 1) * H,
               k * A:(k + 1) * A] = b64["w2_t"][k]
    slab_b[b2_row, 0:4 * A] = b2_cat[0]

    return dict(slab_a=jnp.asarray(slab_a, jnp.float32),
                slab_b=jnp.asarray(slab_b, matmul_dtype))


# ------------------------------ forward pass ---------------------------------

@partial(jax.jit, static_argnames=("united", "critics_average"))
def critic_forward(packed, state, action, united=False, critics_average=False):
    B, T, Sd = state.shape
    Ad = action.shape[-1]
    D = Sd + Ad
    A = Ad
    slab_a = packed["slab_a"]
    slab_b = packed["slab_b"]
    H = slab_a.shape[1]
    LANES = slab_b.shape[1]

    # static slab row offsets (same formula as pack_params)
    a_bias_row = _round_up(D, 8)
    b1_row = _round_up(H, 8)
    w2_row = _round_up(b1_row + 1, 8)
    b2_row = _round_up(w2_row + LANES, 8)

    # Small-batch regime: combine state/action once in the wrapper so the
    # kernel has a single data input. (For very large B*T keep them split to
    # avoid the extra HBM pass.)
    x2 = jnp.concatenate([state, action], axis=-1).reshape(B * T, D)
    x2 = x2.astype(jnp.float32)

    # Batch tiling: each grid block covers whole batches (B_blk*T input rows),
    # weights stay VMEM-resident (constant index_map). Tile capped for v7x's
    # smaller VMEM; z intermediate is B_blk*T x 128 f32 (<= 4 MiB).
    B_blk = B if B <= 1024 else 1024
    nb = pl.cdiv(B, B_blk)

    cost = pl.CostEstimate(
        flops=2 * B * T * (D * H + H * LANES) + 2 * B * LANES * LANES,
        transcendentals=B * T * LANES,
        bytes_accessed=(x2.size * 4
                        + slab_a.size * slab_a.dtype.itemsize
                        + slab_b.size * slab_b.dtype.itemsize
                        + B * LANES * 4))

    kernel = partial(_critic_fused_kernel, T=T, D=D, H=H, LANES=LANES,
                     a_bias_row=a_bias_row, b1_row=b1_row,
                     w2_row=w2_row, b2_row=b2_row)

    out = pl.pallas_call(
        kernel,
        grid=(nb,),
        out_shape=jax.ShapeDtypeStruct((B, LANES), jnp.float32),
        in_specs=[
            pl.BlockSpec((B_blk * T, D), lambda i: (i, 0)),
            pl.BlockSpec(slab_a.shape, lambda i: (0, 0)),
            pl.BlockSpec(slab_b.shape, lambda i: (0, 0)),
        ],
        out_specs=pl.BlockSpec((B_blk, LANES), lambda i: (i, 0)),
        compiler_params=pltpu.CompilerParams(
            dimension_semantics=("parallel",)),
        cost_estimate=cost,
    )(x2, slab_a, slab_b)

    xs = [out[:, k * A:(k + 1) * A] for k in range(4)]
    if not united:
        return xs
    stack = jnp.stack(xs[:3], axis=-1)
    mn = jnp.min(stack, axis=-1)
    q = mn if not critics_average else 0.7 * mn + 0.3 * jnp.mean(stack, axis=-1)
    return q, xs[3]


# ----------------------------- float64 reference ------------------------------
# Follows the original (un-fused) PyTorch semantics, including the flat
# row-major reshape reinterpretation inside FourierTransform.

def critic_forward_ref(base, state, action):
    b64 = {k: np.asarray(v, np.float64) for k, v in base.items()}
    st = np.asarray(state, np.float64)
    ac = np.asarray(action, np.float64)
    B, T, _ = st.shape
    H = b64["w_in"].shape[1]
    x = np.concatenate([st, ac], axis=-1)
    h = x.reshape(B * T, -1) @ b64["w_in"] + b64["b_in"]
    h = h.reshape(B, T, H)
    outs = []
    for k in range(4):
        xr = h.reshape(B, H, T)                      # flat reinterpretation
        yr = xr @ b64["wfft_t"][k]                   # (B, H, T)
        yk = yr.reshape(B, T, H)                     # flat reinterpretation
        z = yk @ b64["w1_t"][k] + b64["b1"][k]
        z = np.sin(z)
        z = np.where(z > 0, z, 0.1 * z)
        q = z @ b64["w2_t"][k] + b64["b2"][k]
        outs.append(q.mean(axis=1))
    return outs


# ---------------------------------- main -------------------------------------

if __name__ == "__main__":
    B, T = 2, 8
    state_dim, action_dim, hidden_dim = 6, 4, 32

    key = jax.random.PRNGKey(0)
    kp, ks, ka = jax.random.split(key, 3)
    base = init_params(kp, state_dim, action_dim, T, hidden_dim)
    state = jax.random.normal(ks, (B, T, state_dim), jnp.float32)
    action = jax.random.normal(ka, (B, T, action_dim), jnp.float32)

    ref = critic_forward_ref(base, state, action)          # float64 baseline

    # f32-weight path: tight check that the fused algebra is exact
    packed_f32 = pack_params(base, matmul_dtype=jnp.float32)
    xs32 = critic_forward(packed_f32, state, action, united=False)
    xs32 = [np.asarray(jax.block_until_ready(v), np.float64) for v in xs32]
    for a, b in zip(xs32, ref):
        assert a.shape == (B, action_dim)
        assert np.allclose(a, b, atol=2e-3, rtol=2e-3), (a, b)

    # bf16 matmul path (production): f32 accumulation, looser tolerance
    packed = pack_params(base, matmul_dtype=jnp.bfloat16)
    xs = critic_forward(packed, state, action, united=False)
    xs = [np.asarray(jax.block_until_ready(v), np.float64) for v in xs]
    for a, b in zip(xs, ref):
        assert a.shape == (B, action_dim)
        assert np.allclose(a, b, atol=2e-2, rtol=2e-2), (a, b)

    # united path (min over the first 3 critics) + critics_average variant
    q, s2_out = critic_forward(packed, state, action, united=True)
    jax.block_until_ready(q)
    jax.block_until_ready(s2_out)
    q_ref = np.min(np.stack(ref[:3], axis=-1), axis=-1)
    assert np.allclose(np.asarray(q, np.float64), q_ref, atol=2e-2, rtol=2e-2)

    qa, _ = critic_forward(packed, state, action, united=True,
                           critics_average=True)
    jax.block_until_ready(qa)

    print("KERNEL_OK")
</pallas_src>

<mosaic_0001>
module attributes {stable_mosaic.version = 11 : i64} {
  func.func @_critic_fused_kernel(%arg0: i32, %arg1: memref<16x10xf32, #tpu.memory_space<vmem>>, %arg2: memref<24x32xf32, #tpu.memory_space<vmem>>, %arg3: memref<176x128xf32, #tpu.memory_space<vmem>>, %arg4: memref<2x128xf32, #tpu.memory_space<vmem>>) attributes {dimension_semantics = [#tpu.dimension_semantics<parallel>], iteration_bounds = array<i64: 1>, scalar_prefetch = 0 : i64, scratch_operands = 0 : i64, tpu.core_type = #tpu.core_type<tc>, window_params = [{transform_indices = @transform_0, window_bounds = array<i64: 16, 10>}, {pipeline_mode = #tpu.pipeline_mode<synchronous>, transform_indices = @transform_1, window_bounds = array<i64: 24, 32>}, {pipeline_mode = #tpu.pipeline_mode<synchronous>, transform_indices = @transform_2, window_bounds = array<i64: 176, 128>}, {transform_indices = @transform_3, window_bounds = array<i64: 2, 128>}]} {
    %c0 = arith.constant 0 : index
    %c0_0 = arith.constant 0 : index
    %0 = vector.load %arg2[%c0, %c0_0] : memref<24x32xf32, #tpu.memory_space<vmem>>, vector<10x32xf32>
    %c16 = arith.constant 16 : index
    %c0_1 = arith.constant 0 : index
    %1 = vector.load %arg2[%c16, %c0_1] : memref<24x32xf32, #tpu.memory_space<vmem>>, vector<1x32xf32>
    %c0_2 = arith.constant 0 : index
    %c0_3 = arith.constant 0 : index
    %2 = vector.load %arg1[%c0_2, %c0_3] : memref<16x10xf32, #tpu.memory_space<vmem>>, vector<16x10xf32>
    %cst = arith.constant dense<0.000000e+00> : vector<16x32xf32>
    %3 = tpu.matmul %2, %0, %cst {dimension_numbers = #tpu.dot_dimension_numbers<[1], [0], [0], [1], [0, 0, 1, 1], [], []>} : vector<16x10xf32>, vector<10x32xf32>, vector<16x32xf32> -> vector<16x32xf32>
    %4 = vector.broadcast %1 : vector<1x32xf32> to vector<16x32xf32>
    %5 = arith.addf %3, %4 : vector<16x32xf32>
    %c0_4 = arith.constant 0 : index
    %c0_5 = arith.constant 0 : index
    %6 = vector.load %arg3[%c0_4, %c0_5] : memref<176x128xf32, #tpu.memory_space<vmem>>, vector<32x128xf32>
    %c32 = arith.constant 32 : index
    %c0_6 = arith.constant 0 : index
    %7 = vector.load %arg3[%c32, %c0_6] : memref<176x128xf32, #tpu.memory_space<vmem>>, vector<1x128xf32>
    %cst_7 = arith.constant dense<0.000000e+00> : vector<16x128xf32>
    %8 = tpu.matmul %5, %6, %cst_7 {dimension_numbers = #tpu.dot_dimension_numbers<[1], [0], [0], [1], [0, 0, 1, 1], [], []>} : vector<16x32xf32>, vector<32x128xf32>, vector<16x128xf32> -> vector<16x128xf32>
    %9 = vector.broadcast %7 : vector<1x128xf32> to vector<16x128xf32>
    %10 = arith.addf %8, %9 : vector<16x128xf32>
    %11 = math.sin %10 : vector<16x128xf32>
    %cst_8 = arith.constant 0.000000e+00 : f32
    %12 = vector.broadcast %cst_8 : f32 to vector<16x128xf32>
    %13 = arith.cmpf ogt, %11, %12 : vector<16x128xf32>
    %cst_9 = arith.constant 1.000000e-01 : f32
    %14 = vector.broadcast %cst_9 : f32 to vector<16x128xf32>
    %15 = arith.mulf %14, %11 : vector<16x128xf32>
    %16 = arith.select %13, %11, %15 : vector<16x128xi1>, vector<16x128xf32>
    %17 = vector.shape_cast %16 : vector<16x128xf32> to vector<2x8x128xf32>
    %cst_10 = arith.constant dense<0.000000e+00> : vector<2x128xf32>
    %18 = vector.multi_reduction <add>, %17, %cst_10 [1] : vector<2x8x128xf32> to vector<2x128xf32>
    %cst_11 = arith.constant 8.000000e+00 : f32
    %19 = vector.broadcast %cst_11 : f32 to vector<2x128xf32>
    %20 = arith.divf %18, %19 : vector<2x128xf32>
    %c40 = arith.constant 40 : index
    %c0_12 = arith.constant 0 : index
    %21 = vector.load %arg3[%c40, %c0_12] : memref<176x128xf32, #tpu.memory_space<vmem>>, vector<128x128xf32>
    %c168 = arith.constant 168 : index
    %c0_13 = arith.constant 0 : index
    %22 = vector.load %arg3[%c168, %c0_13] : memref<176x128xf32, #tpu.memory_space<vmem>>, vector<1x128xf32>
    %cst_14 = arith.constant dense<0.000000e+00> : vector<2x128xf32>
    %23 = tpu.matmul %20, %21, %cst_14 {dimension_numbers = #tpu.dot_dimension_numbers<[1], [0], [0], [1], [0, 0, 1, 1], [], []>} : vector<2x128xf32>, vector<128x128xf32>, vector<2x128xf32> -> vector<2x128xf32>
    %24 = vector.broadcast %22 : vector<1x128xf32> to vector<2x128xf32>
    %25 = arith.addf %23, %24 : vector<2x128xf32>
    %c0_15 = arith.constant 0 : index
    %c0_16 = arith.constant 0 : index
    %26 = vector.load %arg4[%c0_15, %c0_16] : memref<2x128xf32, #tpu.memory_space<vmem>>, vector<2x128xf32>
    tpu.vector_store %arg4[%c0_15, %c0_16], %25 {strides = array<i32>} : memref<2x128xf32, #tpu.memory_space<vmem>>, vector<2x128xf32>,
    return
  }
  func.func @transform_0(%arg0: i32) -> (i32, i32) {
    %c0_i32 = arith.constant 0 : i32
    %c0_i32_0 = arith.constant 0 : i32
    return %arg0, %c0_i32 : i32, i32
  }
  func.func @transform_1(%arg0: i32) -> (i32, i32) {
    %c0_i32 = arith.constant 0 : i32
    %c0_i32_0 = arith.constant 0 : i32
    %c0_i32_1 = arith.constant 0 : i32
    return %c0_i32, %c0_i32_0 : i32, i32
  }
  func.func @transform_2(%arg0: i32) -> (i32, i32) {
    %c0_i32 = arith.constant 0 : i32
    %c0_i32_0 = arith.constant 0 : i32
    %c0_i32_1 = arith.constant 0 : i32
    return %c0_i32, %c0_i32_0 : i32, i32
  }
  func.func @transform_3(%arg0: i32) -> (i32, i32) {
    %c0_i32 = arith.constant 0 : i32
    %c0_i32_0 = arith.constant 0 : i32
    return %arg0, %c0_i32 : i32, i32
  }
}

</mosaic_0001>

<llo_original>
// kernel: critic_forward.1
$region0: #{critic_forward.1}
  #allocation0 [shape = 'u32[]', space=smem, size = 0x4, offset = 0x4, fixed_abs, tag = 'smem constant byte address 0x4 - core index']
  #allocation1 [shape = 'u32[72,128]{1,0:T(1,128)}', space=vmem, size = 0x9000, scoped, tag = 'internal scratch']
  %s0 = inlined_call_operand.vmem [shape: f32[16,10], index: 0, kind: input, shape index: {}]
  %s1 = inlined_call_operand.vmem [shape: f32[24,32], index: 1, kind: input, shape index: {}]
  %s2 = inlined_call_operand.hbm [shape: f32[176,128], index: 2, kind: input, shape index: {}]
  %s3 = inlined_call_operand.vmem [shape: f32[2,128], index: 3, kind: output, shape index: {}]
  %s4 = sld [smem:[#allocation0]]
  $region26: #{critic_forward.1} parent=0
    _
  %s6 = ssub.s32 1, %s4
  %s7 = scalar_select 0, %s6, %s4
  $region1: #{critic_forward.1} parent=0
    #allocation2 [shape = 'u8[90112]{0}', space=vmem, size = 0x16000, scoped, tag = 'input window, operand 2, single buffered']
    #allocation3 [shape = 's32[1]{0}', space=sflag, size = 0x4, scoped, tag = 'scoped memory for critic_forward.1']
    %8 = vsyncpa [#allocation3], 0
    // Predicated region
    $region2: #{critic_forward.1} parent=1 // pred_check
      _
    $region3: #{critic_forward.1} parent=1 // pred_check_branch
      %10 = sbr.rel (0) target = $region5
    $region4: #{critic_forward.1} parent=1 // pred_region
      _
    $region5: #{critic_forward.1} parent=1 // pred_fallthru
      _
    // Predicated region
    $region6: #{critic_forward.1} parent=1 // pred_check
      _
    $region7: #{critic_forward.1} parent=1 // pred_check_branch
      %12 = sbr.rel (0) target = $region9
    $region8: #{critic_forward.1} parent=1 // pred_region
      _
    $region9: #{critic_forward.1} parent=1 // pred_fallthru
      _
    // Predicated region
    $region10: #{critic_forward.1} parent=1 // pred_check
      _
    $region11: #{critic_forward.1} parent=1 // pred_check_branch
      %14 = sbr.rel (0) target = $region13
    $region12: #{critic_forward.1} parent=1 // pred_region
      %16 = vsyncadd [#allocation3], 0
      %s17 = sshll.u32 %s2, 4
      %s18 = int_to_ptr.hbm [resolvable:$true] %s17
      %s19 = sshll.u32 [#allocation2], 4
      %s20 = int_to_ptr.vmem [resolvable:$true] %s19
      %25 = dma.hbm_to_vmem [thread:$0]  %s18, 2816, %s20, [#allocation3], 128, 128, 8
    $region13: #{critic_forward.1} parent=1 // pred_fallthru
      _
    // Predicated region
    $region14: #{critic_forward.1} parent=1 // pred_check
      _
    $region15: #{critic_forward.1} parent=1 // pred_check_branch
      %27 = sbr.rel (0) target = $region17
    $region16: #{critic_forward.1} parent=1 // pred_region
      %29 = dma.done [#allocation3], 2816
    $region17: #{critic_forward.1} parent=1 // pred_fallthru
      _
    %v30 = vld [vmem:[%s1] sm:$0xff]
    %v31 = vld [vmem:[%s1 + $0x8] sm:$0x3]
    %v32 = vld [vmem:[%s1 + $0x10] sm:$0x1]
    %v33 = vld [vmem:[%s0] sm:$0xff]
    %v34 = vld [vmem:[%s0 + $0x8] sm:$0xff]
    %v35 = vperm.slane %v32, 0
    %vm36 = vcmask 80896
    %v38 = vsel %vm36, %v33, 0
    %v41 = vsel %vm36, %v34, 0
    %vm43 = vcmask 1041408
    %v45 = vsel %vm43, %v31, 0
    %47 = vmatpush.msra.mxu0 0.0
    %48 = vmatpush.msra.mxu0 0.0
    %49 = vmatpush.msra.mxu0 0.0
    %50 = vmatpush.msra.mxu0 0.0
    %51 = vmatpush.msra.mxu0 0.0
    %52 = vmatpush.msra.mxu0 0.0
    %53 = vmatpush.msra.mxu0 0.0
    %54 = vmatpush.msra.mxu0 0.0
    %55 = vmatpush.msra.mxu0 0.0
    %56 = vmatpush.msra.mxu0 0.0
    %57 = vmatpush.msra.mxu0 0.0
    %58 = vmatpush.msra.mxu0 0.0
    %59 = vmatpush.msra.mxu0 0.0
    %60 = vmatpush.msra.mxu0 0.0
    %61 = vmatpush.msra.mxu0 %v45
    %62 = vmatpush.msra.mxu0 %v30
    %63 = vmatmul.f32.gmra.mxu0 %v38
    %v64 = vpop.f32.mrf.mxu0
    %v65 = vadd.f32 %v35, %v64
    %66 = vmatmul.f32.gmra.mxu0 %v41
    %v67 = vpop.f32.mrf.mxu0
    %v68 = vadd.f32 %v35, %v67
    %69 = vdwg.mxu0
    %v70 = vld [vmem:[#allocation2] sm:$0xff]
    %v71 = vld [vmem:[#allocation2 + $0x8] sm:$0xff]
    %v72 = vld [vmem:[#allocation2 + $0x10] sm:$0xff]
    %v73 = vld [vmem:[#allocation2 + $0x18] sm:$0xff]
    %v74 = vld [vmem:[#allocation2 + $0x20] sm:$0x1]
    %v75 = vperm.slane %v74, 0
    %vm76 = vcmask 261120
    %v78 = vsel %vm76, %v65, 0
    %v81 = vsel %vm76, %v68, 0
    %83 = vmatpush.msra.mxu0 0.0
    %84 = vmatpush.msra.mxu0 0.0
    %85 = vmatpush.msra.mxu0 0.0
    %86 = vmatpush.msra.mxu0 0.0
    %87 = vmatpush.msra.mxu0 0.0
    %88 = vmatpush.msra.mxu0 0.0
    %89 = vmatpush.msra.mxu0 0.0
    %90 = vmatpush.msra.mxu0 0.0
    %91 = vmatpush.msra.mxu0 0.0
    %92 = vmatpush.msra.mxu0 0.0
    %93 = vmatpush.msra.mxu0 0.0
    %94 = vmatpush.msra.mxu0 0.0
    %95 = vmatpush.msra.mxu0 %v73
    %96 = vmatpush.msra.mxu0 %v72
    %97 = vmatpush.msra.mxu0 %v71
    %98 = vmatpush.msra.mxu0 %v70
    %99 = vmatmul.f32.gmra.mxu0 %v78
    %v100 = vpop.f32.mrf.mxu0
    %v101 = vadd.f32 %v75, %v100
    %102 = vmatmul.f32.gmra.mxu0 %v81
    %v103 = vpop.f32.mrf.mxu0
    %v104 = vadd.f32 %v75, %v103
    %105 = vdwg.mxu0
    %v106 = vand.u32 2147483647, %v101
    %vm107 = vcmp.le.f32.partialorder %v106, 0.7853982
    %vm108 = vcmp.lt.s32.totalorder %v101, 0
    %v109 = vand.u32 %v101, 2139095040
    %v110 = vshrl.u32 %v109, 23
    %v111 = vsub.s32 %v110, 127
    %v112 = vand.u32 2147483647, %v101
    %v113 = vand.u32 %v112, 8388607
    %v114 = vor.u32 %v113, 8388608
    %v115 = vsub.s32 0, %v114
    %v116 = vadd.s32 %v111, 1
    %vm117 = vcmp.gt.s32.totalorder %v116, 0
    %v118 = vsel %vm117, %v116, 0
    %v119 = vshrl.u32 %v118, 5
    %v120 = vand.u32 %v118, 31
    %v121 = vsub.s32 32, %v120
    %v122 = vshrl.u32 683565275, %v121
    %v123 = vshll.u32 683565275, %v120
    %v124 = vshrl.u32 2475754826, %v121
    %v125 = vor.u32 %v123, %v124
    %v126 = vshll.u32 2475754826, %v120
    %v127 = vshrl.u32 2131351028, %v121
    %v128 = vor.u32 %v126, %v127
    %v129 = vshll.u32 2131351028, %v120
    %v130 = vshrl.u32 2102212464, %v121
    %v131 = vor.u32 %v129, %v130
    %v132 = vshll.u32 2102212464, %v120
    %v133 = vshrl.u32 920167782, %v121
    %v134 = vor.u32 %v132, %v133
    %v135 = vshll.u32 920167782, %v120
    %v136 = vshrl.u32 1326507024, %v121
    %v137 = vor.u32 %v135, %v136
    %vm138 = vcmp.lt.s32.totalorder %v119, 1
    %vm139 = vcmp.lt.s32.totalorder %v119, 2
    %vm140 = vcmp.lt.s32.totalorder %v119, 3
    %vm141 = vcmp.lt.s32.totalorder %v119, 4
    %v142 = vsel %vm138, %v122, %v125
    %v143 = vsel %vm141, %v131, 2102212464
    %v144 = vsel %vm140, %v128, %v143
    %v145 = vsel %vm139, %v142, %v144
    %v146 = vsel %vm138, %v125, %v128
    %v147 = vsel %vm141, %v134, 920167782
    %v148 = vsel %vm140, %v131, %v147
    %v149 = vsel %vm139, %v146, %v148
    %v150 = vsel %vm138, %v128, %v131
    %v151 = vsel %vm141, %v137, 1326507024
    %v152 = vsel %vm140, %v134, %v151
    %v153 = vsel %vm139, %v150, %v152
    %v154 = vshll.u32 %v114, 8
    %v155 = vand.u32 %v154, 65535
    %v156 = vshrl.u32 %v154, 16
    %v157 = vand.u32 %v153, 65535
    %v158 = vshrl.u32 %v153, 16
    %v159 = vmul.u32 %v155, %v157
    %v160 = vmul.u32 %v155, %v158
    %v161 = vmul.u32 %v156, %v157
    %v162 = vmul.u32 %v156, %v158
    %v163 = vshll.u32 %v160, 16
    %v164 = vshrl.u32 %v160, 16
    %v165 = vshll.u32 %v161, 16
    %v166 = vshrl.u32 %v161, 16
    %vm167 = vc.u32 %v159, %v163
    %v168 = vsel %vm167, 1, 0
    %v169 = vadd.s32 %v159, %v163
    %v170 = vadd.s32 %v162, %v168
    %vm171 = vc.u32 %v169, %v165
    %v172 = vsel %vm171, 1, 0
    %v173 = vadd.s32 %v169, %v165
    %v174 = vadd.s32 %v170, %v172
    %v175 = vadd.s32 %v174, %v164
    %v176 = vadd.s32 %v175, %v166
    %v177 = vand.u32 %v154, 65535
    %v178 = vshrl.u32 %v154, 16
    %v179 = vand.u32 %v149, 65535
    %v180 = vshrl.u32 %v149, 16
    %v181 = vmul.u32 %v177, %v179
    %v182 = vmul.u32 %v177, %v180
    %v183 = vmul.u32 %v178, %v179
    %v184 = vmul.u32 %v178, %v180
    %v185 = vshll.u32 %v182, 16
    %v186 = vshrl.u32 %v182, 16
    %v187 = vshll.u32 %v183, 16
    %v188 = vshrl.u32 %v183, 16
    %vm189 = vc.u32 %v181, %v185
    %v190 = vsel %vm189, 1, 0
    %v191 = vadd.s32 %v181, %v185
    %v192 = vadd.s32 %v184, %v190
    %vm193 = vc.u32 %v191, %v187
    %v194 = vsel %vm193, 1, 0
    %v195 = vadd.s32 %v191, %v187
    %v196 = vadd.s32 %v192, %v194
    %v197 = vadd.s32 %v196, %v186
    %v198 = vadd.s32 %v197, %v188
    %v199 = vmul.u32 %v154, %v145
    %v200 = vadd.s32 %v176, %v195
    %vm201 = vc.u32 %v176, %v195
    %v202 = vadd.s32 %v198, 1
    %v203 = vsel %vm201, %v202, %v198
    %v204 = vadd.s32 %v199, %v203
    %v205 = vadd.s32 %v204, 536870912
    %v206 = vshrl.u32 %v205, 30
    %v207 = vshll.u32 %v206, 30
    %v208 = vsub.s32 %v204, %v207
    %vm209 = vcmp.lt.s32.totalorder %v208, 0
    %v210 = vsub.s32 0, %v208
    %v211 = vsel %vm209, %v210, %v208
    %v212 = vclz %v211
    %v213 = vsub.s32 %v212, 2
    %vm214 = vcmp.gt.s32.totalorder 0, %v213
    %v215 = vsel %vm214, 0, %v213
    %v216 = vsub.s32 32, %v215
    %v217 = vshll.u32 %v208, %v215
    %v218 = vshrl.u32 %v200, %v216
    %v219 = vor.u32 %v217, %v218
    %v220 = vsub.s32 4294967266, %v215
    %v221 = vadd.s32 %v220, 127
    %v222 = vshll.u32 %v221, 23
    %v223 = vor.u32 4788187, %v222
    %v224 = vand.u32 2147483647, %v223
    %v226 = vcvt.s32.f32 %v219
    %v227 = vmul.f32 %v226, %v224
    %v228 = vxor.u32 %v227, 2147483648
    %v229 = vsel %vm108, %v228, %v227
    %v230 = vsub.s32 4, %v206
    %v231 = vsel %vm108, %v230, %v206
    %v232 = vsel %vm107, %v101, %v229
    %v233 = vsel %vm107, 0, %v231
    %v234 = vmul.f32 %v232, %v232
    %v235 = vmul.f32 %v234, -0.001358992
    %v236 = vadd.f32 %v235, 0.041655596
    %v237 = vmul.f32 %v234, %v236
    %v238 = vadd.f32 %v237, -0.4999988
    %v239 = vmul.f32 %v234, %v238
    %v240 = vadd.f32 1.0, %v239
    %v241 = vmul.f32 %v232, %v232
    %v242 = vmul.f32 %v241, -0.00019511016
    %v243 = vadd.f32 %v242, 0.008332121
    %v244 = vmul.f32 %v241, %v243
    %v245 = vadd.f32 %v244, -0.16666654
    %v246 = vmul.f32 %v241, %v245
    %v247 = vadd.f32 %v246, 1.0
    %v248 = vmul.f32 %v247, %v232
    %vm249 = vweird.f32 %v101
    %v250 = vadd.s32 %v233, 3
    %v251 = vand.u32 %v250, 3
    %vm252 = vcmp.lt.s32.totalorder %v251, 2
    %vm253 = vcmp.eq.s32.totalorder %v251, 0
    %v254 = vxor.u32 %v248, 2147483648
    %v255 = vsel %vm253, %v240, %v254
    %vm256 = vcmp.eq.s32.totalorder %v251, 2
    %v257 = vxor.u32 %v240, 2147483648
    %v258 = vsel %vm256, %v257, %v248
    %v259 = vsel %vm252, %v255, %v258
    %v260 = vsel %vm249, nan, %v259
    %v261 = vand.u32 2147483647, %v104
    %vm262 = vcmp.le.f32.partialorder %v261, 0.7853982
    %vm263 = vcmp.lt.s32.totalorder %v104, 0
    %v264 = vand.u32 %v104, 2139095040
    %v265 = vshrl.u32 %v264, 23
    %v266 = vsub.s32 %v265, 127
    %v267 = vand.u32 2147483647, %v104
    %v268 = vand.u32 %v267, 8388607
    %v269 = vor.u32 %v268, 8388608
    %v270 = vsub.s32 0, %v269
    %v271 = vadd.s32 %v266, 1
    %vm272 = vcmp.gt.s32.totalorder %v271, 0
    %v273 = vsel %vm272, %v271, 0
    %v274 = vshrl.u32 %v273, 5
    %v275 = vand.u32 %v273, 31
    %v276 = vsub.s32 32, %v275
    %v277 = vshrl.u32 683565275, %v276
    %v278 = vshll.u32 683565275, %v275
    %v279 = vshrl.u32 2475754826, %v276
    %v280 = vor.u32 %v278, %v279
    %v281 = vshll.u32 2475754826, %v275
    %v282 = vshrl.u32 2131351028, %v276
    %v283 = vor.u32 %v281, %v282
    %v284 = vshll.u32 2131351028, %v275
    %v285 = vshrl.u32 2102212464, %v276
    %v286 = vor.u32 %v284, %v285
    %v287 = vshll.u32 2102212464, %v275
    %v288 = vshrl.u32 920167782, %v276
    %v289 = vor.u32 %v287, %v288
    %v290 = vshll.u32 920167782, %v275
    %v291 = vshrl.u32 1326507024, %v276
    %v292 = vor.u32 %v290, %v291
    %vm293 = vcmp.lt.s32.totalorder %v274, 1
    %vm294 = vcmp.lt.s32.totalorder %v274, 2
    %vm295 = vcmp.lt.s32.totalorder %v274, 3
    %vm296 = vcmp.lt.s32.totalorder %v274, 4
    %v297 = vsel %vm293, %v277, %v280
    %v298 = vsel %vm296, %v286, 2102212464
    %v299 = vsel %vm295, %v283, %v298
    %v300 = vsel %vm294, %v297, %v299
    %v301 = vsel %vm293, %v280, %v283
    %v302 = vsel %vm296, %v289, 920167782
    %v303 = vsel %vm295, %v286, %v302
    %v304 = vsel %vm294, %v301, %v303
    %v305 = vsel %vm293, %v283, %v286
    %v306 = vsel %vm296, %v292, 1326507024
    %v307 = vsel %vm295, %v289, %v306
    %v308 = vsel %vm294, %v305, %v307
    %v309 = vshll.u32 %v269, 8
    %v310 = vand.u32 %v309, 65535
    %v311 = vshrl.u32 %v309, 16
    %v312 = vand.u32 %v308, 65535
    %v313 = vshrl.u32 %v308, 16
    %v314 = vmul.u32 %v310, %v312
    %v315 = vmul.u32 %v310, %v313
    %v316 = vmul.u32 %v311, %v312
    %v317 = vmul.u32 %v311, %v313
    %v318 = vshll.u32 %v315, 16
    %v319 = vshrl.u32 %v315, 16
    %v320 = vshll.u32 %v316, 16
    %v321 = vshrl.u32 %v316, 16
    %vm322 = vc.u32 %v314, %v318
    %v323 = vsel %vm322, 1, 0
    %v324 = vadd.s32 %v314, %v318
    %v325 = vadd.s32 %v317, %v323
    %vm326 = vc.u32 %v324, %v320
    %v327 = vsel %vm326, 1, 0
    %v328 = vadd.s32 %v324, %v320
    %v329 = vadd.s32 %v325, %v327
    %v330 = vadd.s32 %v329, %v319
    %v331 = vadd.s32 %v330, %v321
    %v332 = vand.u32 %v309, 65535
    %v333 = vshrl.u32 %v309, 16
    %v334 = vand.u32 %v304, 65535
    %v335 = vshrl.u32 %v304, 16
    %v336 = vmul.u32 %v332, %v334
    %v337 = vmul.u32 %v332, %v335
    %v338 = vmul.u32 %v333, %v334
    %v339 = vmul.u32 %v333, %v335
    %v340 = vshll.u32 %v337, 16
    %v341 = vshrl.u32 %v337, 16
    %v342 = vshll.u32 %v338, 16
    %v343 = vshrl.u32 %v338, 16
    %vm344 = vc.u32 %v336, %v340
    %v345 = vsel %vm344, 1, 0
    %v346 = vadd.s32 %v336, %v340
    %v347 = vadd.s32 %v339, %v345
    %vm348 = vc.u32 %v346, %v342
    %v349 = vsel %vm348, 1, 0
    %v350 = vadd.s32 %v346, %v342
    %v351 = vadd.s32 %v347, %v349
    %v352 = vadd.s32 %v351, %v341
    %v353 = vadd.s32 %v352, %v343
    %v354 = vmul.u32 %v309, %v300
    %v355 = vadd.s32 %v331, %v350
    %vm356 = vc.u32 %v331, %v350
    %v357 = vadd.s32 %v353, 1
    %v358 = vsel %vm356, %v357, %v353
    %v359 = vadd.s32 %v354, %v358
    %v360 = vadd.s32 %v359, 536870912
    %v361 = vshrl.u32 %v360, 30
    %v362 = vshll.u32 %v361, 30
    %v363 = vsub.s32 %v359, %v362
    %vm364 = vcmp.lt.s32.totalorder %v363, 0
    %v365 = vsub.s32 0, %v363
    %v366 = vsel %vm364, %v365, %v363
    %v367 = vclz %v366
    %v368 = vsub.s32 %v367, 2
    %vm369 = vcmp.gt.s32.totalorder 0, %v368
    %v370 = vsel %vm369, 0, %v368
    %v371 = vsub.s32 32, %v370
    %v372 = vshll.u32 %v363, %v370
    %v373 = vshrl.u32 %v355, %v371
    %v374 = vor.u32 %v372, %v373
    %v375 = vsub.s32 4294967266, %v370
    %v376 = vadd.s32 %v375, 127
    %v377 = vshll.u32 %v376, 23
    %v378 = vor.u32 4788187, %v377
    %v379 = vand.u32 2147483647, %v378
    %v381 = vcvt.s32.f32 %v374
    %v382 = vmul.f32 %v381, %v379
    %v383 = vxor.u32 %v382, 2147483648
    %v384 = vsel %vm263, %v383, %v382
    %v385 = vsub.s32 4, %v361
    %v386 = vsel %vm263, %v385, %v361
    %v387 = vsel %vm262, %v104, %v384
    %v388 = vsel %vm262, 0, %v386
    %v389 = vmul.f32 %v387, %v387
    %v390 = vmul.f32 %v389, -0.001358992
    %v391 = vadd.f32 %v390, 0.041655596
    %v392 = vmul.f32 %v389, %v391
    %v393 = vadd.f32 %v392, -0.4999988
    %v394 = vmul.f32 %v389, %v393
    %v395 = vadd.f32 1.0, %v394
    %v396 = vmul.f32 %v387, %v387
    %v397 = vmul.f32 %v396, -0.00019511016
    %v398 = vadd.f32 %v397, 0.008332121
    %v399 = vmul.f32 %v396, %v398
    %v400 = vadd.f32 %v399, -0.16666654
    %v401 = vmul.f32 %v396, %v400
    %v402 = vadd.f32 %v401, 1.0
    %v403 = vmul.f32 %v402, %v387
    %vm404 = vweird.f32 %v104
    %v405 = vadd.s32 %v388, 3
    %v406 = vand.u32 %v405, 3
    %vm407 = vcmp.lt.s32.totalorder %v406, 2
    %vm408 = vcmp.eq.s32.totalorder %v406, 0
    %v409 = vxor.u32 %v403, 2147483648
    %v410 = vsel %vm408, %v395, %v409
    %vm411 = vcmp.eq.s32.totalorder %v406, 2
    %v412 = vxor.u32 %v395, 2147483648
    %v413 = vsel %vm411, %v412, %v403
    %v414 = vsel %vm407, %v410, %v413
    %v415 = vsel %vm404, nan, %v414
    %vm416 = vcmp.gt.f32.partialorder %v260, 0.0
    %vm417 = vcmp.gt.f32.partialorder %v415, 0.0
    %v418 = vmul.f32 %v260, 0.1
    %v419 = vmul.f32 %v415, 0.1
    %v420 = vsel %vm416, %v260, %v418
    %v421 = vsel %vm417, %v415, %v419
    %v422 = vrot.slane %v420, 4
    %v423 = vadd.f32 %v420, %v422
    %v424 = vrot.slane %v423, 2
    %v425 = vadd.f32 %v423, %v424
    %v426 = vrot.slane %v425, 1
    %v427 = vadd.f32 %v425, %v426
    %v428 = vrot.slane %v421, 4
    %v429 = vadd.f32 %v421, %v428
    %v430 = vrot.slane %v429, 2
    %v431 = vadd.f32 %v429, %v430
    %v432 = vrot.slane %v431, 1
    %v433 = vadd.f32 %v431, %v432
    %v434 = vrcp.pop 8.0
    %v435 = vmul.f32 8.0, %v434
    %v436 = vsub.f32 1.0, %v435
    %v437 = vmul.f32 %v434, %v436
    %v438 = vadd.f32 %v434, %v437
    %vm439 = vweird.f32 %v434
    %v440 = vsel %vm439, %v434, %v438
    %v441 = vmul.f32 %v427, %v440
    %v442 = vmul.f32 %v433, %v440
    %v443 = vld [vmem:[#allocation2 + $0x28] sm:$0xff]
    %v444 = vld [vmem:[#allocation2 + $0x30] sm:$0xff]
    %v445 = vld [vmem:[#allocation2 + $0x38] sm:$0xff]
    %v446 = vld [vmem:[#allocation2 + $0x40] sm:$0xff]
    %v447 = vld [vmem:[#allocation2 + $0x48] sm:$0xff]
    %v448 = vld [vmem:[#allocation2 + $0x50] sm:$0xff]
    %v449 = vld [vmem:[#allocation2 + $0x58] sm:$0xff]
    %v450 = vld [vmem:[#allocation2 + $0x60] sm:$0xff]
    %v451 = vld [vmem:[#allocation2 + $0x68] sm:$0xff]
    %v452 = vld [vmem:[#allocation2 + $0x70] sm:$0xff]
    %v453 = vld [vmem:[#allocation2 + $0x78] sm:$0xff]
    %v454 = vld [vmem:[#allocation2 + $0x80] sm:$0xff]
    %v455 = vld [vmem:[#allocation2 + $0x88] sm:$0xff]
    %v456 = vld [vmem:[#allocation2 + $0x90] sm:$0xff]
    %v457 = vld [vmem:[#allocation2 + $0x98] sm:$0xff]
    %v458 = vld [vmem:[#allocation2 + $0xa0] sm:$0xff]
    %v459 = vld [vmem:[#allocation2 + $0xa8] sm:$0x1]
    %v460 = vperm.slane %v459, 0
    %vm463 = vcmask 1041409
    %v464 = vsel %vm463, %v442, %v441
    %466 = vmatpush.msra.mxu0 %v458
    %467 = vmatpush.msra.mxu0 %v457
    %468 = vmatpush.msra.mxu0 %v456
    %469 = vmatpush.msra.mxu0 %v455
    %470 = vmatpush.msra.mxu0 %v454
    %471 = vmatpush.msra.mxu0 %v453
    %472 = vmatpush.msra.mxu0 %v452
    %473 = vmatpush.msra.mxu0 %v451
    %474 = vmatpush.msra.mxu0 %v450
    %475 = vmatpush.msra.mxu0 %v449
    %476 = vmatpush.msra.mxu0 %v448
    %477 = vmatpush.msra.mxu0 %v447
    %478 = vmatpush.msra.mxu0 %v446
    %479 = vmatpush.msra.mxu0 %v445
    %480 = vmatpush.msra.mxu0 %v444
    %481 = vmatpush.msra.mxu0 %v443
    %482 = vmatmul.f32.gmra.mxu0 %v464
    %v483 = vpop.f32.mrf.mxu0
    %v484 = vadd.f32 %v460, %v483
    %485 = vdwg.mxu0
    %486 = vst [vmem:[%s3] sm:$0x3] %v484
    // Predicated region
    $region18: #{critic_forward.1} parent=1 // pred_check
      _
    $region19: #{critic_forward.1} parent=1 // pred_check_branch
      %488 = sbr.rel (0) target = $region21
    $region20: #{critic_forward.1} parent=1 // pred_region
      _
    $region21: #{critic_forward.1} parent=1 // pred_fallthru
      _
    // Predicated region
    $region22: #{critic_forward.1} parent=1 // pred_check
      _
    $region23: #{critic_forward.1} parent=1 // pred_check_branch
      %490 = sbr.rel (0) target = $region25
    $region24: #{critic_forward.1} parent=1 // pred_region
      _
    $region25: #{critic_forward.1} parent=1 // pred_fallthru
      _
    %491 = vsyncpa [#allocation3], 1

</llo_original>
